<compile_context>
chip_gen: v7x
topology: tpu7x:2x2x1
jax: 0.10.0
libtpu: 0.0.40
codegen_flags: <defaults>
</compile_context>

<pallas_src>
import functools

import jax
import jax.numpy as jnp
from jax.experimental import pallas as pl
from jax.experimental.pallas import tpu as pltpu

KERNEL_SIZE = 25
HALF = (KERNEL_SIZE - 1) // 2  # 12


# ---------------------------------------------------------------------------
# Pallas kernel: one grid step == TB batch rows.
# Weights are stored (in_features, out_features), i.e. transposed relative to
# torch.nn.Linear.weight, so y = x @ W + b.
# ---------------------------------------------------------------------------
def gated_mlp_kernel(x_ref, wma_t_ref, w_in_ref, b_in_ref, wg_ref, bg_ref,
                     wt1_ref, bt1_ref, wt2_ref, bt2_ref,
                     wr1_ref, br1_ref, wr2_ref, br2_ref,
                     out_ref):
    # Default MXU precision (bf16 passes, f32 accumulation) per perf review.
    dot = functools.partial(jnp.dot, preferred_element_type=jnp.float32)

    tb = x_ref.shape[0]

    # ---- input_layer(x) for every (row, time step): lane-dense (TB, S) -----
    x_t = x_ref[...]                                   # (TB, F, S), seq on lanes
    w_in = w_in_ref[...]                               # (F, 1)
    xw = jnp.sum(x_t * w_in[None, :, :], axis=1)       # (TB, S)

    # ---- series decomposition folded through the linear input layer --------
    #   input_layer(moving_avg(x)) = (x . w_in) @ W_ma^T + b_in
    t_ma = dot(xw, wma_t_ref[...])                     # (TB, S)
    b_in = b_in_ref[...]                               # (1, 1)
    trend = t_ma + b_in                                # input_layer(trend)
    resid = (xw - t_ma) + b_in                         # input_layer(residual)

    # ---- shared sigmoid input gate: one fused (2*TB, S) x (S, S) matmul ----
    both = jnp.concatenate([trend, resid], axis=0)     # (2*TB, S)
    gate = jax.nn.sigmoid(dot(both, wg_ref[...]) + bg_ref[...])
    both = both * gate
    trend_g = both[:tb]                                # (TB, S)
    resid_g = both[tb:]                                # (TB, S)

    # ---- trend / residual 2-layer MLPs (Linear(S,H) -> Linear(H,H)) --------
    ht = dot(trend_g, wt1_ref[...]) + bt1_ref[...]     # (TB, H)
    out_t = dot(ht, wt2_ref[...]) + bt2_ref[...]       # (TB, H)
    hr = dot(resid_g, wr1_ref[...]) + br1_ref[...]     # (TB, H)
    out_r = dot(hr, wr2_ref[...]) + br2_ref[...]       # (TB, H)

    # fused, row-dense output slab: (TB, 2*H) = [trend | residual]
    h = out_t.shape[-1]
    out_ref[:, 0:h] = out_t
    out_ref[:, h:2 * h] = out_r


# ---------------------------------------------------------------------------
# Glue: moving-average matrix, pallas_call wrapper.
# ---------------------------------------------------------------------------
def build_moving_avg_matrix(seq_len):
    """W_ma[t, s]: weight of x[s] in the replicate-padded 25-tap moving average.

    Built analytically as a banded matrix (edge columns absorb the replicate
    padding) -- no (S, K, S) one_hot blowup at trace time.
    """
    t = jnp.arange(seq_len)[:, None]
    s = jnp.arange(seq_len)[None, :]
    interior = (jnp.abs(s - t) <= HALF).astype(jnp.float32)
    # Column 0 absorbs every tap that clips below 0; column S-1 above S-1.
    left = jnp.clip(HALF + 1 - t, 0, KERNEL_SIZE).astype(jnp.float32)
    right = jnp.clip(t - (seq_len - 1) + HALF + 1, 0, KERNEL_SIZE).astype(jnp.float32)
    w = jnp.where(s == 0, left, jnp.where(s == seq_len - 1, right, interior))
    return w / float(KERNEL_SIZE)


def gated_mlp_forward(x, params, *, max_rows_per_step=128):
    B, S, F = x.shape
    H = params["wt1"].shape[1]

    # Batch tiling: TB rows per grid step fills MXU rows and amortizes the
    # per-step pipeline overhead.  TB = min(128, B): 128 saturates v5e's
    # 128x128 MXU and keeps the grid >= 2 steps on v7x's two TensorCores when
    # B is large; if B <= 128 the whole batch goes in one step (grid of 1).
    TB = min(max_rows_per_step, B)
    grid_b = pl.cdiv(B, TB)
    B_pad = grid_b * TB

    # Put the sequence axis on lanes for the in-kernel input_layer contraction.
    x_t = jnp.transpose(x, (0, 2, 1)).astype(jnp.float32)        # (B, F, S)
    if B_pad != B:
        x_t = jnp.pad(x_t, ((0, B_pad - B), (0, 0), (0, 0)))

    wma_t = jnp.transpose(build_moving_avg_matrix(S))            # (S, S) = W_ma^T
    w_in_col = jnp.transpose(params["w_in"])                     # (F, 1)

    weights = [wma_t, w_in_col, params["b_in"], params["wg"], params["bg"],
               params["wt1"], params["bt1"], params["wt2"], params["bt2"],
               params["wr1"], params["br1"], params["wr2"], params["br2"]]

    in_specs = [pl.BlockSpec((TB, F, S), lambda b: (b, 0, 0))]
    in_specs += [pl.BlockSpec(w.shape, lambda b, nd=w.ndim: (0,) * nd)
                 for w in weights]

    out_spec = pl.BlockSpec((TB, 2 * H), lambda b: (b, 0))
    out_shape = jax.ShapeDtypeStruct((B_pad, 2 * H), jnp.float32)

    fused = pl.pallas_call(
        gated_mlp_kernel,
        grid=(grid_b,),
        in_specs=in_specs,
        out_specs=out_spec,
        out_shape=out_shape,
        compiler_params=pltpu.CompilerParams(
            dimension_semantics=("parallel",)),
    )(x_t, *weights)

    fused = fused[:B].reshape(B, 2, H)
    return fused[:, 0:1, :], fused[:, 1:2, :]        # (B,1,H) trend, residual


# ---------------------------------------------------------------------------
# Pure-JAX reference (mirrors the PyTorch forward exactly), for validation.
# ---------------------------------------------------------------------------
def reference_forward(x, params):
    B, S, F = x.shape
    hi = jax.lax.Precision.HIGHEST

    # series_decomp: replicate-padded AvgPool1d(kernel=25, stride=1)
    front = jnp.repeat(x[:, :1, :], HALF, axis=1)
    end = jnp.repeat(x[:, -1:, :], HALF, axis=1)
    xp = jnp.concatenate([front, x, end], axis=1)                   # (B, S+24, F)
    trend = jnp.stack([jnp.mean(xp[:, t:t + KERNEL_SIZE, :], axis=1)
                       for t in range(S)], axis=1)                  # (B, S, F)
    res = x - trend

    def lin(y, w, b):   # w: (in, out), b: (1, out)
        return jnp.einsum("...i,io->...o", y, w, precision=hi) + b

    t_lin = lin(trend, jnp.transpose(params["w_in"]), params["b_in"])   # (B, S, 1)
    r_lin = lin(res, jnp.transpose(params["w_in"]), params["b_in"])     # (B, S, 1)
    t_lin = jnp.transpose(t_lin, (0, 2, 1))                             # (B, 1, S)
    r_lin = jnp.transpose(r_lin, (0, 2, 1))                             # (B, 1, S)

    t_lin = t_lin * jax.nn.sigmoid(lin(t_lin, params["wg"], params["bg"]))
    r_lin = r_lin * jax.nn.sigmoid(lin(r_lin, params["wg"], params["bg"]))

    out_t = lin(lin(t_lin, params["wt1"], params["bt1"]), params["wt2"], params["bt2"])
    out_r = lin(lin(r_lin, params["wr1"], params["br1"]), params["wr2"], params["br2"])
    return out_t, out_r


def init_params(key, seq_len, num_features, hidden_units):
    ks = jax.random.split(key, 12)
    s = 0.1
    n = lambda k, shape: s * jax.random.normal(k, shape, dtype=jnp.float32)
    return {
        "w_in": n(ks[0], (1, num_features)),          # input_layer weight (out=1, in=F)
        "b_in": n(ks[1], (1, 1)),                     # input_layer bias
        "wg":   n(ks[2], (seq_len, seq_len)),         # input_gate weight (in, out)
        "bg":   n(ks[3], (1, seq_len)),
        "wt1":  n(ks[4], (seq_len, hidden_units)),    # trend_mlp[0] (in, out)
        "bt1":  n(ks[5], (1, hidden_units)),
        "wt2":  n(ks[6], (hidden_units, hidden_units)),
        "bt2":  n(ks[7], (1, hidden_units)),
        "wr1":  n(ks[8], (seq_len, hidden_units)),    # residual_mlp[0] (in, out)
        "br1":  n(ks[9], (1, hidden_units)),
        "wr2":  n(ks[10], (hidden_units, hidden_units)),
        "br2":  n(ks[11], (1, hidden_units)),
    }


if __name__ == "__main__":
    B, SEQ_LEN, NUM_FEATURES, HIDDEN = 2, 8, 4, 32
    # pred_len is an unused attribute in the torch forward; no kernel work needed.

    key = jax.random.PRNGKey(0)
    kx, kp = jax.random.split(key)
    x = jax.random.normal(kx, (B, SEQ_LEN, NUM_FEATURES), dtype=jnp.float32)
    params = init_params(kp, SEQ_LEN, NUM_FEATURES, HIDDEN)

    trend_out, resid_out = gated_mlp_forward(x, params)
    jax.block_until_ready((trend_out, resid_out))

    ref_t, ref_r = reference_forward(x, params)
    assert trend_out.shape == (B, 1, HIDDEN) and resid_out.shape == (B, 1, HIDDEN)
    # Tolerance accounts for default (bf16-pass, f32-accumulate) MXU precision
    # in the kernel vs. the HIGHEST-precision f32 reference.
    assert jnp.allclose(trend_out, ref_t, atol=2e-3, rtol=2e-3)
    assert jnp.allclose(resid_out, ref_r, atol=2e-3, rtol=2e-3)

    print("KERNEL_OK")
</pallas_src>

<mosaic_0001>
module attributes {stable_mosaic.version = 11 : i64} {
  func.func @gated_mlp_kernel(%arg0: i32, %arg1: memref<2x4x8xf32, #tpu.memory_space<vmem>>, %arg2: memref<8x8xf32, #tpu.memory_space<vmem>>, %arg3: memref<4x1xf32, #tpu.memory_space<vmem>>, %arg4: memref<1x1xf32, #tpu.memory_space<vmem>>, %arg5: memref<8x8xf32, #tpu.memory_space<vmem>>, %arg6: memref<1x8xf32, #tpu.memory_space<vmem>>, %arg7: memref<8x32xf32, #tpu.memory_space<vmem>>, %arg8: memref<1x32xf32, #tpu.memory_space<vmem>>, %arg9: memref<32x32xf32, #tpu.memory_space<vmem>>, %arg10: memref<1x32xf32, #tpu.memory_space<vmem>>, %arg11: memref<8x32xf32, #tpu.memory_space<vmem>>, %arg12: memref<1x32xf32, #tpu.memory_space<vmem>>, %arg13: memref<32x32xf32, #tpu.memory_space<vmem>>, %arg14: memref<1x32xf32, #tpu.memory_space<vmem>>, %arg15: memref<2x64xf32, #tpu.memory_space<vmem>>) attributes {dimension_semantics = [#tpu.dimension_semantics<parallel>], iteration_bounds = array<i64: 1>, scalar_prefetch = 0 : i64, scratch_operands = 0 : i64, tpu.core_type = #tpu.core_type<tc>, window_params = [{transform_indices = @transform_0, window_bounds = array<i64: 2, 4, 8>}, {pipeline_mode = #tpu.pipeline_mode<synchronous>, transform_indices = @transform_1, window_bounds = array<i64: 8, 8>}, {pipeline_mode = #tpu.pipeline_mode<synchronous>, transform_indices = @transform_2, window_bounds = array<i64: 4, 1>}, {pipeline_mode = #tpu.pipeline_mode<synchronous>, transform_indices = @transform_3, window_bounds = array<i64: 1, 1>}, {pipeline_mode = #tpu.pipeline_mode<synchronous>, transform_indices = @transform_4, window_bounds = array<i64: 8, 8>}, {pipeline_mode = #tpu.pipeline_mode<synchronous>, transform_indices = @transform_5, window_bounds = array<i64: 1, 8>}, {pipeline_mode = #tpu.pipeline_mode<synchronous>, transform_indices = @transform_6, window_bounds = array<i64: 8, 32>}, {pipeline_mode = #tpu.pipeline_mode<synchronous>, transform_indices = @transform_7, window_bounds = array<i64: 1, 32>}, {pipeline_mode = #tpu.pipeline_mode<synchronous>, transform_indices = @transform_8, window_bounds = array<i64: 32, 32>}, {pipeline_mode = #tpu.pipeline_mode<synchronous>, transform_indices = @transform_9, window_bounds = array<i64: 1, 32>}, {pipeline_mode = #tpu.pipeline_mode<synchronous>, transform_indices = @transform_10, window_bounds = array<i64: 8, 32>}, {pipeline_mode = #tpu.pipeline_mode<synchronous>, transform_indices = @transform_11, window_bounds = array<i64: 1, 32>}, {pipeline_mode = #tpu.pipeline_mode<synchronous>, transform_indices = @transform_12, window_bounds = array<i64: 32, 32>}, {pipeline_mode = #tpu.pipeline_mode<synchronous>, transform_indices = @transform_13, window_bounds = array<i64: 1, 32>}, {transform_indices = @transform_14, window_bounds = array<i64: 2, 64>}]} {
    %c0 = arith.constant 0 : index
    %c0_0 = arith.constant 0 : index
    %c0_1 = arith.constant 0 : index
    %0 = vector.load %arg1[%c0, %c0_0, %c0_1] : memref<2x4x8xf32, #tpu.memory_space<vmem>>, vector<2x4x8xf32>
    %c0_2 = arith.constant 0 : index
    %c0_3 = arith.constant 0 : index
    %1 = vector.load %arg3[%c0_2, %c0_3] : memref<4x1xf32, #tpu.memory_space<vmem>>, vector<4x1xf32>
    %2 = vector.shape_cast %1 : vector<4x1xf32> to vector<1x4x1xf32>
    %3 = vector.broadcast %2 : vector<1x4x1xf32> to vector<2x4x8xf32>
    %4 = arith.mulf %0, %3 : vector<2x4x8xf32>
    %cst = arith.constant dense<0.000000e+00> : vector<2x8xf32>
    %5 = vector.multi_reduction <add>, %4, %cst [1] : vector<2x4x8xf32> to vector<2x8xf32>
    %c0_4 = arith.constant 0 : index
    %c0_5 = arith.constant 0 : index
    %6 = vector.load %arg2[%c0_4, %c0_5] : memref<8x8xf32, #tpu.memory_space<vmem>>, vector<8x8xf32>
    %cst_6 = arith.constant dense<0.000000e+00> : vector<2x8xf32>
    %7 = tpu.matmul %5, %6, %cst_6 {dimension_numbers = #tpu.dot_dimension_numbers<[1], [0], [0], [1], [0, 0, 1, 1], [], []>} : vector<2x8xf32>, vector<8x8xf32>, vector<2x8xf32> -> vector<2x8xf32>
    %c0_7 = arith.constant 0 : index
    %c0_8 = arith.constant 0 : index
    %8 = vector.load %arg4[%c0_7, %c0_8] : memref<1x1xf32, #tpu.memory_space<vmem>>, vector<1x1xf32>
    %9 = vector.broadcast %8 : vector<1x1xf32> to vector<2x8xf32>
    %10 = arith.addf %7, %9 : vector<2x8xf32>
    %11 = arith.subf %5, %7 : vector<2x8xf32>
    %12 = vector.broadcast %8 : vector<1x1xf32> to vector<2x8xf32>
    %13 = arith.addf %11, %12 : vector<2x8xf32>
    %14 = tpu.concatenate %10, %13 in 0 : vector<2x8xf32>, vector<2x8xf32> -> vector<4x8xf32>
    %c0_9 = arith.constant 0 : index
    %c0_10 = arith.constant 0 : index
    %15 = vector.load %arg5[%c0_9, %c0_10] : memref<8x8xf32, #tpu.memory_space<vmem>>, vector<8x8xf32>
    %cst_11 = arith.constant dense<0.000000e+00> : vector<4x8xf32>
    %16 = tpu.matmul %14, %15, %cst_11 {dimension_numbers = #tpu.dot_dimension_numbers<[1], [0], [0], [1], [0, 0, 1, 1], [], []>} : vector<4x8xf32>, vector<8x8xf32>, vector<4x8xf32> -> vector<4x8xf32>
    %c0_12 = arith.constant 0 : index
    %c0_13 = arith.constant 0 : index
    %17 = vector.load %arg6[%c0_12, %c0_13] : memref<1x8xf32, #tpu.memory_space<vmem>>, vector<1x8xf32>
    %18 = vector.broadcast %17 : vector<1x8xf32> to vector<4x8xf32>
    %19 = arith.addf %16, %18 : vector<4x8xf32>
    %20 = arith.negf %19 : vector<4x8xf32>
    %21 = math.exp %20 : vector<4x8xf32>
    %cst_14 = arith.constant 1.000000e+00 : f32
    %22 = vector.broadcast %cst_14 : f32 to vector<4x8xf32>
    %23 = arith.addf %22, %21 : vector<4x8xf32>
    %24 = arith.divf %22, %23 : vector<4x8xf32>
    %25 = arith.mulf %14, %24 : vector<4x8xf32>
    %26 = vector.extract_strided_slice %25 {offsets = [0, 0], sizes = [2, 8], strides = [1, 1]} : vector<4x8xf32> to vector<2x8xf32>
    %27 = vector.extract_strided_slice %25 {offsets = [2, 0], sizes = [2, 8], strides = [1, 1]} : vector<4x8xf32> to vector<2x8xf32>
    %c0_15 = arith.constant 0 : index
    %c0_16 = arith.constant 0 : index
    %28 = vector.load %arg7[%c0_15, %c0_16] : memref<8x32xf32, #tpu.memory_space<vmem>>, vector<8x32xf32>
    %cst_17 = arith.constant dense<0.000000e+00> : vector<2x32xf32>
    %29 = tpu.matmul %26, %28, %cst_17 {dimension_numbers = #tpu.dot_dimension_numbers<[1], [0], [0], [1], [0, 0, 1, 1], [], []>} : vector<2x8xf32>, vector<8x32xf32>, vector<2x32xf32> -> vector<2x32xf32>
    %c0_18 = arith.constant 0 : index
    %c0_19 = arith.constant 0 : index
    %30 = vector.load %arg8[%c0_18, %c0_19] : memref<1x32xf32, #tpu.memory_space<vmem>>, vector<1x32xf32>
    %31 = vector.broadcast %30 : vector<1x32xf32> to vector<2x32xf32>
    %32 = arith.addf %29, %31 : vector<2x32xf32>
    %c0_20 = arith.constant 0 : index
    %c0_21 = arith.constant 0 : index
    %33 = vector.load %arg9[%c0_20, %c0_21] : memref<32x32xf32, #tpu.memory_space<vmem>>, vector<32x32xf32>
    %cst_22 = arith.constant dense<0.000000e+00> : vector<2x32xf32>
    %34 = tpu.matmul %32, %33, %cst_22 {dimension_numbers = #tpu.dot_dimension_numbers<[1], [0], [0], [1], [0, 0, 1, 1], [], []>} : vector<2x32xf32>, vector<32x32xf32>, vector<2x32xf32> -> vector<2x32xf32>
    %c0_23 = arith.constant 0 : index
    %c0_24 = arith.constant 0 : index
    %35 = vector.load %arg10[%c0_23, %c0_24] : memref<1x32xf32, #tpu.memory_space<vmem>>, vector<1x32xf32>
    %36 = vector.broadcast %35 : vector<1x32xf32> to vector<2x32xf32>
    %37 = arith.addf %34, %36 : vector<2x32xf32>
    %c0_25 = arith.constant 0 : index
    %c0_26 = arith.constant 0 : index
    %38 = vector.load %arg11[%c0_25, %c0_26] : memref<8x32xf32, #tpu.memory_space<vmem>>, vector<8x32xf32>
    %cst_27 = arith.constant dense<0.000000e+00> : vector<2x32xf32>
    %39 = tpu.matmul %27, %38, %cst_27 {dimension_numbers = #tpu.dot_dimension_numbers<[1], [0], [0], [1], [0, 0, 1, 1], [], []>} : vector<2x8xf32>, vector<8x32xf32>, vector<2x32xf32> -> vector<2x32xf32>
    %c0_28 = arith.constant 0 : index
    %c0_29 = arith.constant 0 : index
    %40 = vector.load %arg12[%c0_28, %c0_29] : memref<1x32xf32, #tpu.memory_space<vmem>>, vector<1x32xf32>
    %41 = vector.broadcast %40 : vector<1x32xf32> to vector<2x32xf32>
    %42 = arith.addf %39, %41 : vector<2x32xf32>
    %c0_30 = arith.constant 0 : index
    %c0_31 = arith.constant 0 : index
    %43 = vector.load %arg13[%c0_30, %c0_31] : memref<32x32xf32, #tpu.memory_space<vmem>>, vector<32x32xf32>
    %cst_32 = arith.constant dense<0.000000e+00> : vector<2x32xf32>
    %44 = tpu.matmul %42, %43, %cst_32 {dimension_numbers = #tpu.dot_dimension_numbers<[1], [0], [0], [1], [0, 0, 1, 1], [], []>} : vector<2x32xf32>, vector<32x32xf32>, vector<2x32xf32> -> vector<2x32xf32>
    %c0_33 = arith.constant 0 : index
    %c0_34 = arith.constant 0 : index
    %45 = vector.load %arg14[%c0_33, %c0_34] : memref<1x32xf32, #tpu.memory_space<vmem>>, vector<1x32xf32>
    %46 = vector.broadcast %45 : vector<1x32xf32> to vector<2x32xf32>
    %47 = arith.addf %44, %46 : vector<2x32xf32>
    %c0_35 = arith.constant 0 : index
    %c0_36 = arith.constant 0 : index
    %48 = vector.load %arg15[%c0_35, %c0_36] : memref<2x64xf32, #tpu.memory_space<vmem>>, vector<2x32xf32>
    tpu.vector_store %arg15[%c0_35, %c0_36], %37 {strides = array<i32>} : memref<2x64xf32, #tpu.memory_space<vmem>>, vector<2x32xf32>,
    %c0_37 = arith.constant 0 : index
    %c32 = arith.constant 32 : index
    %49 = vector.load %arg15[%c0_37, %c32] : memref<2x64xf32, #tpu.memory_space<vmem>>, vector<2x32xf32>
    tpu.vector_store %arg15[%c0_37, %c32], %47 {strides = array<i32>} : memref<2x64xf32, #tpu.memory_space<vmem>>, vector<2x32xf32>,
    return
  }
  func.func @transform_0(%arg0: i32) -> (i32, i32, i32) {
    %c0_i32 = arith.constant 0 : i32
    %c0_i32_0 = arith.constant 0 : i32
    %c0_i32_1 = arith.constant 0 : i32
    return %arg0, %c0_i32, %c0_i32_0 : i32, i32, i32
  }
  func.func @transform_1(%arg0: i32) -> (i32, i32) {
    %c0_i32 = arith.constant 0 : i32
    %c0_i32_0 = arith.constant 0 : i32
    %c0_i32_1 = arith.constant 0 : i32
    return %c0_i32, %c0_i32_0 : i32, i32
  }
  func.func @transform_2(%arg0: i32) -> (i32, i32) {
    %c0_i32 = arith.constant 0 : i32
    %c0_i32_0 = arith.constant 0 : i32
    %c0_i32_1 = arith.constant 0 : i32
    return %c0_i32, %c0_i32_0 : i32, i32
  }
  func.func @transform_3(%arg0: i32) -> (i32, i32) {
    %c0_i32 = arith.constant 0 : i32
    %c0_i32_0 = arith.constant 0 : i32
    %c0_i32_1 = arith.constant 0 : i32
    return %c0_i32, %c0_i32_0 : i32, i32
  }
  func.func @transform_4(%arg0: i32) -> (i32, i32) {
    %c0_i32 = arith.constant 0 : i32
    %c0_i32_0 = arith.constant 0 : i32
    %c0_i32_1 = arith.constant 0 : i32
    return %c0_i32, %c0_i32_0 : i32, i32
  }
  func.func @transform_5(%arg0: i32) -> (i32, i32) {
    %c0_i32 = arith.constant 0 : i32
    %c0_i32_0 = arith.constant 0 : i32
    %c0_i32_1 = arith.constant 0 : i32
    return %c0_i32, %c0_i32_0 : i32, i32
  }
  func.func @transform_6(%arg0: i32) -> (i32, i32) {
    %c0_i32 = arith.constant 0 : i32
    %c0_i32_0 = arith.constant 0 : i32
    %c0_i32_1 = arith.constant 0 : i32
    return %c0_i32, %c0_i32_0 : i32, i32
  }
  func.func @transform_7(%arg0: i32) -> (i32, i32) {
    %c0_i32 = arith.constant 0 : i32
    %c0_i32_0 = arith.constant 0 : i32
    %c0_i32_1 = arith.constant 0 : i32
    return %c0_i32, %c0_i32_0 : i32, i32
  }
  func.func @transform_8(%arg0: i32) -> (i32, i32) {
    %c0_i32 = arith.constant 0 : i32
    %c0_i32_0 = arith.constant 0 : i32
    %c0_i32_1 = arith.constant 0 : i32
    return %c0_i32, %c0_i32_0 : i32, i32
  }
  func.func @transform_9(%arg0: i32) -> (i32, i32) {
    %c0_i32 = arith.constant 0 : i32
    %c0_i32_0 = arith.constant 0 : i32
    %c0_i32_1 = arith.constant 0 : i32
    return %c0_i32, %c0_i32_0 : i32, i32
  }
  func.func @transform_10(%arg0: i32) -> (i32, i32) {
    %c0_i32 = arith.constant 0 : i32
    %c0_i32_0 = arith.constant 0 : i32
    %c0_i32_1 = arith.constant 0 : i32
    return %c0_i32, %c0_i32_0 : i32, i32
  }
  func.func @transform_11(%arg0: i32) -> (i32, i32) {
    %c0_i32 = arith.constant 0 : i32
    %c0_i32_0 = arith.constant 0 : i32
    %c0_i32_1 = arith.constant 0 : i32
    return %c0_i32, %c0_i32_0 : i32, i32
  }
  func.func @transform_12(%arg0: i32) -> (i32, i32) {
    %c0_i32 = arith.constant 0 : i32
    %c0_i32_0 = arith.constant 0 : i32
    %c0_i32_1 = arith.constant 0 : i32
    return %c0_i32, %c0_i32_0 : i32, i32
  }
  func.func @transform_13(%arg0: i32) -> (i32, i32) {
    %c0_i32 = arith.constant 0 : i32
    %c0_i32_0 = arith.constant 0 : i32
    %c0_i32_1 = arith.constant 0 : i32
    return %c0_i32, %c0_i32_0 : i32, i32
  }
  func.func @transform_14(%arg0: i32) -> (i32, i32) {
    %c0_i32 = arith.constant 0 : i32
    %c0_i32_0 = arith.constant 0 : i32
    return %arg0, %c0_i32 : i32, i32
  }
}

</mosaic_0001>

<llo_original>
// kernel: tpu_custom_call.1
$region0: #{tpu_custom_call.1}
  #allocation0 [shape = 'u32[]', space=smem, size = 0x4, offset = 0x4, fixed_abs, tag = 'smem constant byte address 0x4 - core index']
  #allocation1 [shape = 'u32[144,128]{1,0:T(1,128)}', space=vmem, size = 0x12000, scoped, tag = 'internal scratch']
  #allocation2 [shape = 'f32[1,1]{1,0:T(1,128)S(1)}', space=vmem, size = 0x200, scoped, tag = 'scoped memory for tpu_custom_call.1']
  %s0 = inlined_call_operand.hbm [shape: f32[2,4,8], index: 0, kind: input, shape index: {}]
  %s1 = inlined_call_operand.hbm [shape: f32[8,8], index: 1, kind: input, shape index: {}]
  %s2 = inlined_call_operand.vmem [shape: f32[4,1], index: 2, kind: input, shape index: {}]
  %s3 = inlined_call_operand.<no memory space> [shape: f32[1,1], index: 3, kind: input, shape index: {}]
  %s4 = inlined_call_operand.hbm [shape: f32[8,8], index: 4, kind: input, shape index: {}]
  %s5 = inlined_call_operand.vmem [shape: f32[1,8], index: 5, kind: input, shape index: {}]
  %s6 = inlined_call_operand.hbm [shape: f32[8,32], index: 6, kind: input, shape index: {}]
  %s7 = inlined_call_operand.vmem [shape: f32[1,32], index: 7, kind: input, shape index: {}]
  %s8 = inlined_call_operand.vmem [shape: f32[32,32], index: 8, kind: input, shape index: {}]
  %s9 = inlined_call_operand.hbm [shape: f32[1,32], index: 9, kind: input, shape index: {}]
  %s10 = inlined_call_operand.vmem [shape: f32[8,32], index: 10, kind: input, shape index: {}]
  %s11 = inlined_call_operand.vmem [shape: f32[1,32], index: 11, kind: input, shape index: {}]
  %s12 = inlined_call_operand.hbm [shape: f32[32,32], index: 12, kind: input, shape index: {}]
  %s13 = inlined_call_operand.vmem [shape: f32[1,32], index: 13, kind: input, shape index: {}]
  %s14 = inlined_call_operand.hbm [shape: f32[2,64], index: 14, kind: output, shape index: {}]
  %s15 = sld [smem:[#allocation0]]
  $region90: #{tpu_custom_call.1} parent=0
    _
  %s17 = ssub.s32 1, %s15
  %s18 = scalar_select 0, %s17, %s15
  %v19 = vstv %s3
  %20 = vst [vmem:[#allocation2] sm:$0x1] %v19
  $region1: #{tpu_custom_call.1} parent=0
    #allocation3 [shape = 'u8[4096]{0}', space=vmem, size = 0x1000, scoped, tag = 'input window, operand 0, single buffered']
    #allocation4 [shape = 's32[1]{0}', space=sflag, size = 0x4, scoped, tag = 'scoped memory for tpu_custom_call.1']
    #allocation5 [shape = 's32[1]{0}', space=sflag, size = 0x4, scoped, tag = 'scoped memory for tpu_custom_call.1']
    #allocation6 [shape = 'u8[4096]{0}', space=vmem, size = 0x1000, scoped, tag = 'input window, operand 1, single buffered']
    #allocation7 [shape = 's32[1]{0}', space=sflag, size = 0x4, scoped, tag = 'scoped memory for tpu_custom_call.1']
    #allocation8 [shape = 'u8[4096]{0}', space=vmem, size = 0x1000, scoped, tag = 'input window, operand 4, single buffered']
    #allocation9 [shape = 'u8[4096]{0}', space=vmem, size = 0x1000, scoped, tag = 'input window, operand 6, single buffered']
    #allocation10 [shape = 's32[1]{0}', space=sflag, size = 0x4, scoped, tag = 'scoped memory for tpu_custom_call.1']
    #allocation11 [shape = 'u8[512]{0}', space=vmem, size = 0x400, scoped, tag = 'input window, operand 9, single buffered']
    #allocation12 [shape = 'u8[16384]{0}', space=vmem, size = 0x4000, scoped, tag = 'input window, operand 12, single buffered']
    #allocation13 [shape = 's32[1]{0}', space=sflag, size = 0x4, scoped, tag = 'scoped memory for tpu_custom_call.1']
    #allocation14 [shape = 'u8[1024]{0}', space=vmem, size = 0x400, scoped, tag = 'output window, operand 0, single buffered']
    %21 = vsyncpa [#allocation4], 0
    %22 = vsyncpa [#allocation7], 0
    %23 = vsyncpa [#allocation10], 0
    %24 = vsyncpa [#allocation13], 0
    %25 = vsyncpa [#allocation5], 0
    // Predicated region
    $region2: #{tpu_custom_call.1} parent=1 // pred_check
      _
    $region3: #{tpu_custom_call.1} parent=1 // pred_check_branch
      %27 = sbr.rel (0) target = $region5
    $region4: #{tpu_custom_call.1} parent=1 // pred_region
      %s29 = ssub.s32 128, 128
      %30 = vsyncadd [#allocation4], %s29
      %s31 = sshll.u32 [#allocation3], 4
      %s32 = int_to_ptr.vmem [resolvable:$true] %s31
      %37 = dma.hbm_to_vmem [thread:$0]  %s0, 128, %s32, [#allocation4], 64, 64, 4
    $region5: #{tpu_custom_call.1} parent=1 // pred_fallthru
      _
    // Predicated region
    $region6: #{tpu_custom_call.1} parent=1 // pred_check
      _
    $region7: #{tpu_custom_call.1} parent=1 // pred_check_branch
      %39 = sbr.rel (0) target = $region9
    $region8: #{tpu_custom_call.1} parent=1 // pred_region
      %s41 = ssub.s32 128, 128
      %42 = vsyncadd [#allocation7], %s41
      %s44 = sshll.u32 [#allocation6], 4
      %s45 = int_to_ptr.vmem [resolvable:$true] %s44
      %47 = dma.hbm_to_vmem [thread:$0]  %s1, 128, %s45, [#allocation7]
    $region9: #{tpu_custom_call.1} parent=1 // pred_fallthru
      _
    // Predicated region
    $region10: #{tpu_custom_call.1} parent=1 // pred_check
      _
    $region11: #{tpu_custom_call.1} parent=1 // pred_check_branch
      %49 = sbr.rel (0) target = $region13
    $region12: #{tpu_custom_call.1} parent=1 // pred_region
      _
    $region13: #{tpu_custom_call.1} parent=1 // pred_fallthru
      _
    // Predicated region
    $region14: #{tpu_custom_call.1} parent=1 // pred_check
      _
    $region15: #{tpu_custom_call.1} parent=1 // pred_check_branch
      %51 = sbr.rel (0) target = $region17
    $region16: #{tpu_custom_call.1} parent=1 // pred_region
      _
    $region17: #{tpu_custom_call.1} parent=1 // pred_fallthru
      _
    // Predicated region
    $region18: #{tpu_custom_call.1} parent=1 // pred_check
      _
    $region19: #{tpu_custom_call.1} parent=1 // pred_check_branch
      %53 = sbr.rel (0) target = $region21
    $region20: #{tpu_custom_call.1} parent=1 // pred_region
      %s55 = ssub.s32 128, 128
      %56 = vsyncadd [#allocation7], %s55
      %s58 = sshll.u32 [#allocation8], 4
      %s59 = int_to_ptr.vmem [resolvable:$true] %s58
      %61 = dma.hbm_to_vmem [thread:$0]  %s4, 128, %s59, [#allocation7]
    $region21: #{tpu_custom_call.1} parent=1 // pred_fallthru
      _
    // Predicated region
    $region22: #{tpu_custom_call.1} parent=1 // pred_check
      _
    $region23: #{tpu_custom_call.1} parent=1 // pred_check_branch
      %63 = sbr.rel (0) target = $region25
    $region24: #{tpu_custom_call.1} parent=1 // pred_region
      _
    $region25: #{tpu_custom_call.1} parent=1 // pred_fallthru
      _
    // Predicated region
    $region26: #{tpu_custom_call.1} parent=1 // pred_check
      _
    $region27: #{tpu_custom_call.1} parent=1 // pred_check_branch
      %65 = sbr.rel (0) target = $region29
    $region28: #{tpu_custom_call.1} parent=1 // pred_region
      %s67 = ssub.s32 128, 128
      %68 = vsyncadd [#allocation10], %s67
      %s70 = sshll.u32 [#allocation9], 4
      %s71 = int_to_ptr.vmem [resolvable:$true] %s70
      %73 = dma.hbm_to_vmem [thread:$0]  %s6, 128, %s71, [#allocation10]
    $region29: #{tpu_custom_call.1} parent=1 // pred_fallthru
      _
    // Predicated region
    $region30: #{tpu_custom_call.1} parent=1 // pred_check
      _
    $region31: #{tpu_custom_call.1} parent=1 // pred_check_branch
      %75 = sbr.rel (0) target = $region33
    $region32: #{tpu_custom_call.1} parent=1 // pred_region
      _
    $region33: #{tpu_custom_call.1} parent=1 // pred_fallthru
      _
    // Predicated region
    $region34: #{tpu_custom_call.1} parent=1 // pred_check
      _
    $region35: #{tpu_custom_call.1} parent=1 // pred_check_branch
      %77 = sbr.rel (0) target = $region37
    $region36: #{tpu_custom_call.1} parent=1 // pred_region
      _
    $region37: #{tpu_custom_call.1} parent=1 // pred_fallthru
      _
    // Predicated region
    $region38: #{tpu_custom_call.1} parent=1 // pred_check
      _
    $region39: #{tpu_custom_call.1} parent=1 // pred_check_branch
      %79 = sbr.rel (0) target = $region41
    $region40: #{tpu_custom_call.1} parent=1 // pred_region
      %s81 = ssub.s32 16, 16
      %82 = vsyncadd [#allocation10], %s81
      %s84 = sshll.u32 [#allocation11], 4
      %s85 = int_to_ptr.vmem [resolvable:$true] %s84
      %87 = dma.hbm_to_vmem [thread:$0]  %s9, 16, %s85, [#allocation10]
    $region41: #{tpu_custom_call.1} parent=1 // pred_fallthru
      _
    // Predicated region
    $region42: #{tpu_custom_call.1} parent=1 // pred_check
      _
    $region43: #{tpu_custom_call.1} parent=1 // pred_check_branch
      %89 = sbr.rel (0) target = $region45
    $region44: #{tpu_custom_call.1} parent=1 // pred_region
      _
    $region45: #{tpu_custom_call.1} parent=1 // pred_fallthru
      _
    // Predicated region
    $region46: #{tpu_custom_call.1} parent=1 // pred_check
      _
    $region47: #{tpu_custom_call.1} parent=1 // pred_check_branch
      %91 = sbr.rel (0) target = $region49
    $region48: #{tpu_custom_call.1} parent=1 // pred_region
      _
    $region49: #{tpu_custom_call.1} parent=1 // pred_fallthru
      _
    // Predicated region
    $region50: #{tpu_custom_call.1} parent=1 // pred_check
      _
    $region51: #{tpu_custom_call.1} parent=1 // pred_check_branch
      %93 = sbr.rel (0) target = $region53
    $region52: #{tpu_custom_call.1} parent=1 // pred_region
      %s95 = ssub.s32 512, 512
      %96 = vsyncadd [#allocation13], %s95
      %s97 = sshll.u32 [#allocation12], 4
      %s98 = int_to_ptr.vmem [resolvable:$true] %s97
      %103 = dma.hbm_to_vmem [thread:$0]  %s12, 512, %s98, [#allocation13], 128, 128, 8
    $region53: #{tpu_custom_call.1} parent=1 // pred_fallthru
      _
    // Predicated region
    $region54: #{tpu_custom_call.1} parent=1 // pred_check
      _
    $region55: #{tpu_custom_call.1} parent=1 // pred_check_branch
      %105 = sbr.rel (0) target = $region57
    $region56: #{tpu_custom_call.1} parent=1 // pred_region
      _
    $region57: #{tpu_custom_call.1} parent=1 // pred_fallthru
      _
    // Predicated region
    $region58: #{tpu_custom_call.1} parent=1 // pred_check
      _
    $region59: #{tpu_custom_call.1} parent=1 // pred_check_branch
      %107 = sbr.rel (0) target = $region61
    $region60: #{tpu_custom_call.1} parent=1 // pred_region
      %108 = dma.done [#allocation4], 128
    $region61: #{tpu_custom_call.1} parent=1 // pred_fallthru
      _
    // Predicated region
    $region62: #{tpu_custom_call.1} parent=1 // pred_check
      _
    $region63: #{tpu_custom_call.1} parent=1 // pred_check_branch
      %110 = sbr.rel (0) target = $region65
    $region64: #{tpu_custom_call.1} parent=1 // pred_region
      %111 = dma.done [#allocation7], 128
    $region65: #{tpu_custom_call.1} parent=1 // pred_fallthru
      _
    // Predicated region
    $region66: #{tpu_custom_call.1} parent=1 // pred_check
      _
    $region67: #{tpu_custom_call.1} parent=1 // pred_check_branch
      %113 = sbr.rel (0) target = $region69
    $region68: #{tpu_custom_call.1} parent=1 // pred_region
      %114 = dma.done [#allocation7], 128
    $region69: #{tpu_custom_call.1} parent=1 // pred_fallthru
      _
    // Predicated region
    $region70: #{tpu_custom_call.1} parent=1 // pred_check
      _
    $region71: #{tpu_custom_call.1} parent=1 // pred_check_branch
      %116 = sbr.rel (0) target = $region73
    $region72: #{tpu_custom_call.1} parent=1 // pred_region
      %117 = dma.done [#allocation10], 128
    $region73: #{tpu_custom_call.1} parent=1 // pred_fallthru
      _
    // Predicated region
    $region74: #{tpu_custom_call.1} parent=1 // pred_check
      _
    $region75: #{tpu_custom_call.1} parent=1 // pred_check_branch
      %119 = sbr.rel (0) target = $region77
    $region76: #{tpu_custom_call.1} parent=1 // pred_region
      %120 = dma.done [#allocation10], 16
    $region77: #{tpu_custom_call.1} parent=1 // pred_fallthru
      _
    // Predicated region
    $region78: #{tpu_custom_call.1} parent=1 // pred_check
      _
    $region79: #{tpu_custom_call.1} parent=1 // pred_check_branch
      %122 = sbr.rel (0) target = $region81
    $region80: #{tpu_custom_call.1} parent=1 // pred_region
      %123 = dma.done [#allocation13], 512
    $region81: #{tpu_custom_call.1} parent=1 // pred_fallthru
      _
    %v124 = vld [vmem:[#allocation3] sm:$0xf]
    %v125 = vld [vmem:[#allocation3 + $0x4] sm:$0xf]
    %v126 = vld [vmem:[%s2] sm:$0xf]
    %128 = vset.pattern.permute.xlu0 0
    %129 = vperm.xlu0 %128, %v126
    %v130 = vpop.permute.xlu0 %129
    %v132 = vmul.f32 %v124, %v130
    %v133 = vmul.f32 %v125, %v130
    %vm134 = vcmask 60416
    %v135 = vsel %vm134, %v132, 0.0
    %v136 = vrot.slane %v135, 4
    %v137 = vadd.f32 %v135, %v136
    %v138 = vrot.slane %v137, 2
    %v139 = vadd.f32 %v137, %v138
    %v140 = vrot.slane %v139, 1
    %v141 = vadd.f32 %v139, %v140
    %v142 = vsel %vm134, %v133, 0.0
    %v143 = vrot.slane %v142, 4
    %v144 = vadd.f32 %v142, %v143
    %v145 = vrot.slane %v144, 2
    %v146 = vadd.f32 %v144, %v145
    %v147 = vrot.slane %v146, 1
    %v148 = vadd.f32 %v146, %v147
    %v149 = vld [vmem:[#allocation6] sm:$0xff]
    %vm152 = vcmask 1041409
    %v153 = vsel %vm152, %v148, %v141
    %vm154 = vcmask 64512
    %v155 = vsel %vm154, %v153, 0
    %157 = vmatprep.subr.mxu0 0.0
    %158 = vmatpush1.msra.mxu0 %v149
    %159 = vmatprep.subr.mxu0 0.0
    %160 = vmatpush1.msra.mxu0 0.0
    %161 = vmatprep.subr.mxu0 0.0
    %162 = vmatpush1.msra.mxu0 0.0
    %163 = vmatprep.subr.mxu0 0.0
    %164 = vmatpush1.msra.mxu0 0.0
    %165 = vmatprep.subr.mxu0 0.0
    %166 = vmatpush1.msra.mxu0 0.0
    %167 = vmatprep.subr.mxu0 0.0
    %168 = vmatpush1.msra.mxu0 0.0
    %169 = vmatprep.subr.mxu0 0.0
    %170 = vmatpush1.msra.mxu0 0.0
    %171 = vmatprep.subr.mxu0 0.0
    %172 = vmatpush1.msra.mxu0 0.0
    %173 = vmatprep.subr.mxu0 0.0
    %174 = vmatpush1.msra.mxu0 0.0
    %175 = vmatprep.subr.mxu0 0.0
    %176 = vmatpush1.msra.mxu0 0.0
    %177 = vmatprep.subr.mxu0 0.0
    %178 = vmatpush1.msra.mxu0 0.0
    %179 = vmatprep.subr.mxu0 0.0
    %180 = vmatpush1.msra.mxu0 0.0
    %181 = vmatprep.subr.mxu0 0.0
    %182 = vmatpush1.msra.mxu0 0.0
    %183 = vmatprep.subr.mxu0 0.0
    %184 = vmatpush1.msra.mxu0 0.0
    %185 = vmatprep.subr.mxu0 0.0
    %186 = vmatpush1.msra.mxu0 0.0
    %187 = vmatprep.subr.mxu0 0.0
    %188 = vmatpush1.msra.mxu0 0.0
    %189 = vmatprep.subr.mxu0 0.0
    %190 = vmatpush1.msra.mxu0 0.0
    %191 = vmatprep.subr.mxu0 0.0
    %192 = vmatpush1.msra.mxu0 0.0
    %193 = vmatprep.subr.mxu0 0.0
    %194 = vmatpush1.msra.mxu0 0.0
    %195 = vmatprep.subr.mxu0 0.0
    %196 = vmatpush1.msra.mxu0 0.0
    %197 = vmatprep.subr.mxu0 0.0
    %198 = vmatpush1.msra.mxu0 0.0
    %199 = vmatprep.subr.mxu0 0.0
    %200 = vmatpush1.msra.mxu0 0.0
    %201 = vmatprep.subr.mxu0 0.0
    %202 = vmatpush1.msra.mxu0 0.0
    %203 = vmatprep.subr.mxu0 0.0
    %204 = vmatpush1.msra.mxu0 0.0
    %205 = vmatprep.subr.mxu0 0.0
    %206 = vmatpush1.msra.mxu0 0.0
    %207 = vmatprep.subr.mxu0 0.0
    %208 = vmatpush1.msra.mxu0 0.0
    %209 = vmatprep.subr.mxu0 0.0
    %210 = vmatpush1.msra.mxu0 0.0
    %211 = vmatprep.subr.mxu0 0.0
    %212 = vmatpush1.msra.mxu0 0.0
    %213 = vmatprep.subr.mxu0 0.0
    %214 = vmatpush1.msra.mxu0 0.0
    %215 = vmatprep.subr.mxu0 0.0
    %216 = vmatpush1.msra.mxu0 0.0
    %217 = vmatprep.subr.mxu0 0.0
    %218 = vmatpush1.msra.mxu0 0.0
    %219 = vmatprep.subr.mxu0 0.0
    %220 = vmatpush1.msra.mxu0 0.0
    %221 = vmatprep.mubr.f32.mxu0 0.0
    %222 = vmatmul.mubr.f32.gmra.mrb[0].mxu0 %v155
    %v223 = vpop.f32.mrb[0].mxu0
    %v224 = vadd.f32 0.0, %v223
    %v225 = vpop.f32.mrb[0].mxu0
    %226 = vdwg.mxu0
    %v227 = vld [vmem:[#allocation2] sm:$0x1]
    %v229 = vlaneseq
    %v230 = vshrl.u32 %v229, 7
    %v231 = vsub.s32 0, %v230
    %v232 = vrot.slane %v227, %v231
    %233 = vset.pattern.permute.xlu0 0
    %234 = vperm.xlu0 %233, %v232
    %v235 = vpop.permute.xlu0 %234
    %v237 = vadd.f32 %v224, %v235
    %v239 = vrot.slane %v224, 1
    %v242 = vsub.f32 %v141, %v224
    %v243 = vsub.f32 %v148, %v239
    %v244 = vadd.f32 %v242, %v235
    %v245 = vadd.f32 %v243, %v235
    %v248 = vrot.slane %v244, 6
    %v249 = vrot.slane %v245, 5
    %vm250 = vcmask 1043459
    %v251 = vsel %vm250, %v249, %v248
    %vm253 = vcmask 1041408
    %v254 = vsel %vm253, %v237, %v251
    %v255 = vld [vmem:[#allocation8] sm:$0xff]
    %v256 = vld [vmem:[%s5] sm:$0x1]
    %v258 = vlaneseq
    %v259 = vshrl.u32 %v258, 7
    %v260 = vsub.s32 0, %v259
    %v261 = vrot.slane %v256, %v260
    %v264 = vsel %vm154, %v254, 0
    %266 = vmatprep.subr.mxu0 0.0
    %267 = vmatpush1.msra.mxu0 %v255
    %268 = vmatprep.subr.mxu0 0.0
    %269 = vmatpush1.msra.mxu0 0.0
    %270 = vmatprep.subr.mxu0 0.0
    %271 = vmatpush1.msra.mxu0 0.0
    %272 = vmatprep.subr.mxu0 0.0
    %273 = vmatpush1.msra.mxu0 0.0
    %274 = vmatprep.subr.mxu0 0.0
    %275 = vmatpush1.msra.mxu0 0.0
    %276 = vmatprep.subr.mxu0 0.0
    %277 = vmatpush1.msra.mxu0 0.0
    %278 = vmatprep.subr.mxu0 0.0
    %279 = vmatpush1.msra.mxu0 0.0
    %280 = vmatprep.subr.mxu0 0.0
    %281 = vmatpush1.msra.mxu0 0.0
    %282 = vmatprep.subr.mxu0 0.0
    %283 = vmatpush1.msra.mxu0 0.0
    %284 = vmatprep.subr.mxu0 0.0
    %285 = vmatpush1.msra.mxu0 0.0
    %286 = vmatprep.subr.mxu0 0.0
    %287 = vmatpush1.msra.mxu0 0.0
    %288 = vmatprep.subr.mxu0 0.0
    %289 = vmatpush1.msra.mxu0 0.0
    %290 = vmatprep.subr.mxu0 0.0
    %291 = vmatpush1.msra.mxu0 0.0
    %292 = vmatprep.subr.mxu0 0.0
    %293 = vmatpush1.msra.mxu0 0.0
    %294 = vmatprep.subr.mxu0 0.0
    %295 = vmatpush1.msra.mxu0 0.0
    %296 = vmatprep.subr.mxu0 0.0
    %297 = vmatpush1.msra.mxu0 0.0
    %298 = vmatprep.subr.mxu0 0.0
    %299 = vmatpush1.msra.mxu0 0.0
    %300 = vmatprep.subr.mxu0 0.0
    %301 = vmatpush1.msra.mxu0 0.0
    %302 = vmatprep.subr.mxu0 0.0
    %303 = vmatpush1.msra.mxu0 0.0
    %304 = vmatprep.subr.mxu0 0.0
    %305 = vmatpush1.msra.mxu0 0.0
    %306 = vmatprep.subr.mxu0 0.0
    %307 = vmatpush1.msra.mxu0 0.0
    %308 = vmatprep.subr.mxu0 0.0
    %309 = vmatpush1.msra.mxu0 0.0
    %310 = vmatprep.subr.mxu0 0.0
    %311 = vmatpush1.msra.mxu0 0.0
    %312 = vmatprep.subr.mxu0 0.0
    %313 = vmatpush1.msra.mxu0 0.0
    %314 = vmatprep.subr.mxu0 0.0
    %315 = vmatpush1.msra.mxu0 0.0
    %316 = vmatprep.subr.mxu0 0.0
    %317 = vmatpush1.msra.mxu0 0.0
    %318 = vmatprep.subr.mxu0 0.0
    %319 = vmatpush1.msra.mxu0 0.0
    %320 = vmatprep.subr.mxu0 0.0
    %321 = vmatpush1.msra.mxu0 0.0
    %322 = vmatprep.subr.mxu0 0.0
    %323 = vmatpush1.msra.mxu0 0.0
    %324 = vmatprep.subr.mxu0 0.0
    %325 = vmatpush1.msra.mxu0 0.0
    %326 = vmatprep.subr.mxu0 0.0
    %327 = vmatpush1.msra.mxu0 0.0
    %328 = vmatprep.subr.mxu0 0.0
    %329 = vmatpush1.msra.mxu0 0.0
    %330 = vmatprep.mubr.f32.mxu0 0.0
    %331 = vmatmul.mubr.f32.gmra.mrb[0].mxu0 %v264
    %v332 = vpop.f32.mrb[0].mxu0
    %v333 = vadd.f32 %v261, %v332
    %v334 = vpop.f32.mrb[0].mxu0
    %335 = vdwg.mxu0
    %v336 = vxor.u32 %v333, 2147483648
    %v337 = vmul.f32 %v336, 1.442695
    %v338 = vpow.pop %v337
    %v339 = vadd.f32 %v338, 1.0
    %v340 = vrcp.pop %v339
    %v341 = vmul.f32 1.0, %v340
    %v342 = vmul.f32 %v254, %v341
    %v343 = vld [vmem:[#allocation9] sm:$0xff]
    %v344 = vld [vmem:[%s7] sm:$0x1]
    %v346 = vlaneseq
    %v347 = vshrl.u32 %v346, 7
    %v348 = vsub.s32 0, %v347
    %v349 = vrot.slane %v344, %v348
    %v352 = vsel %vm154, %v342, 0
    %354 = vmatprep.subr.mxu0 0.0
    %355 = vmatpush1.msra.mxu0 %v343
    %356 = vmatprep.subr.mxu0 0.0
    %357 = vmatpush1.msra.mxu0 0.0
    %358 = vmatprep.subr.mxu0 0.0
    %359 = vmatpush1.msra.mxu0 0.0
    %360 = vmatprep.subr.mxu0 0.0
    %361 = vmatpush1.msra.mxu0 0.0
    %362 = vmatprep.subr.mxu0 0.0
    %363 = vmatpush1.msra.mxu0 0.0
    %364 = vmatprep.subr.mxu0 0.0
    %365 = vmatpush1.msra.mxu0 0.0
    %366 = vmatprep.subr.mxu0 0.0
    %367 = vmatpush1.msra.mxu0 0.0
    %368 = vmatprep.subr.mxu0 0.0
    %369 = vmatpush1.msra.mxu0 0.0
    %370 = vmatprep.subr.mxu0 0.0
    %371 = vmatpush1.msra.mxu0 0.0
    %372 = vmatprep.subr.mxu0 0.0
    %373 = vmatpush1.msra.mxu0 0.0
    %374 = vmatprep.subr.mxu0 0.0
    %375 = vmatpush1.msra.mxu0 0.0
    %376 = vmatprep.subr.mxu0 0.0
    %377 = vmatpush1.msra.mxu0 0.0
    %378 = vmatprep.subr.mxu0 0.0
    %379 = vmatpush1.msra.mxu0 0.0
    %380 = vmatprep.subr.mxu0 0.0
    %381 = vmatpush1.msra.mxu0 0.0
    %382 = vmatprep.subr.mxu0 0.0
    %383 = vmatpush1.msra.mxu0 0.0
    %384 = vmatprep.subr.mxu0 0.0
    %385 = vmatpush1.msra.mxu0 0.0
    %386 = vmatprep.subr.mxu0 0.0
    %387 = vmatpush1.msra.mxu0 0.0
    %388 = vmatprep.subr.mxu0 0.0
    %389 = vmatpush1.msra.mxu0 0.0
    %390 = vmatprep.subr.mxu0 0.0
    %391 = vmatpush1.msra.mxu0 0.0
    %392 = vmatprep.subr.mxu0 0.0
    %393 = vmatpush1.msra.mxu0 0.0
    %394 = vmatprep.subr.mxu0 0.0
    %395 = vmatpush1.msra.mxu0 0.0
    %396 = vmatprep.subr.mxu0 0.0
    %397 = vmatpush1.msra.mxu0 0.0
    %398 = vmatprep.subr.mxu0 0.0
    %399 = vmatpush1.msra.mxu0 0.0
    %400 = vmatprep.subr.mxu0 0.0
    %401 = vmatpush1.msra.mxu0 0.0
    %402 = vmatprep.subr.mxu0 0.0
    %403 = vmatpush1.msra.mxu0 0.0
    %404 = vmatprep.subr.mxu0 0.0
    %405 = vmatpush1.msra.mxu0 0.0
    %406 = vmatprep.subr.mxu0 0.0
    %407 = vmatpush1.msra.mxu0 0.0
    %408 = vmatprep.subr.mxu0 0.0
    %409 = vmatpush1.msra.mxu0 0.0
    %410 = vmatprep.subr.mxu0 0.0
    %411 = vmatpush1.msra.mxu0 0.0
    %412 = vmatprep.subr.mxu0 0.0
    %413 = vmatpush1.msra.mxu0 0.0
    %414 = vmatprep.subr.mxu0 0.0
    %415 = vmatpush1.msra.mxu0 0.0
    %416 = vmatprep.subr.mxu0 0.0
    %417 = vmatpush1.msra.mxu0 0.0
    %418 = vmatprep.mubr.f32.mxu0 0.0
    %419 = vmatmul.mubr.f32.gmra.mrb[0].mxu0 %v352
    %v420 = vpop.f32.mrb[0].mxu0
    %v421 = vadd.f32 %v349, %v420
    %v422 = vpop.f32.mrb[0].mxu0
    %423 = vdwg.mxu0
    %v424 = vld [vmem:[%s8] sm:$0xff]
    %v425 = vld [vmem:[%s8 + $0x8] sm:$0xff]
    %v426 = vld [vmem:[%s8 + $0x10] sm:$0xff]
    %v427 = vld [vmem:[%s8 + $0x18] sm:$0xff]
    %v428 = vld [vmem:[#allocation11] sm:$0x1]
    %v430 = vlaneseq
    %v431 = vshrl.u32 %v430, 7
    %v432 = vsub.s32 0, %v431
    %v433 = vrot.slane %v428, %v432
    %vm435 = vcmask 261120
    %v437 = vsel %vm435, %v421, 0
    %439 = vmatprep.subr.mxu0 0.0
    %440 = vmatpush1.msra.mxu0 %v424
    %441 = vmatprep.subr.mxu0 0.0
    %442 = vmatpush1.msra.mxu0 %v425
    %443 = vmatprep.subr.mxu0 0.0
    %444 = vmatpush1.msra.mxu0 %v426
    %445 = vmatprep.subr.mxu0 0.0
    %446 = vmatpush1.msra.mxu0 %v427
    %447 = vmatprep.subr.mxu0 0.0
    %448 = vmatpush1.msra.mxu0 0.0
    %449 = vmatprep.subr.mxu0 0.0
    %450 = vmatpush1.msra.mxu0 0.0
    %451 = vmatprep.subr.mxu0 0.0
    %452 = vmatpush1.msra.mxu0 0.0
    %453 = vmatprep.subr.mxu0 0.0
    %454 = vmatpush1.msra.mxu0 0.0
    %455 = vmatprep.subr.mxu0 0.0
    %456 = vmatpush1.msra.mxu0 0.0
    %457 = vmatprep.subr.mxu0 0.0
    %458 = vmatpush1.msra.mxu0 0.0
    %459 = vmatprep.subr.mxu0 0.0
    %460 = vmatpush1.msra.mxu0 0.0
    %461 = vmatprep.subr.mxu0 0.0
    %462 = vmatpush1.msra.mxu0 0.0
    %463 = vmatprep.subr.mxu0 0.0
    %464 = vmatpush1.msra.mxu0 0.0
    %465 = vmatprep.subr.mxu0 0.0
    %466 = vmatpush1.msra.mxu0 0.0
    %467 = vmatprep.subr.mxu0 0.0
    %468 = vmatpush1.msra.mxu0 0.0
    %469 = vmatprep.subr.mxu0 0.0
    %470 = vmatpush1.msra.mxu0 0.0
    %471 = vmatprep.subr.mxu0 0.0
    %472 = vmatpush1.msra.mxu0 0.0
    %473 = vmatprep.subr.mxu0 0.0
    %474 = vmatpush1.msra.mxu0 0.0
    %475 = vmatprep.subr.mxu0 0.0
    %476 = vmatpush1.msra.mxu0 0.0
    %477 = vmatprep.subr.mxu0 0.0
    %478 = vmatpush1.msra.mxu0 0.0
    %479 = vmatprep.subr.mxu0 0.0
    %480 = vmatpush1.msra.mxu0 0.0
    %481 = vmatprep.subr.mxu0 0.0
    %482 = vmatpush1.msra.mxu0 0.0
    %483 = vmatprep.subr.mxu0 0.0
    %484 = vmatpush1.msra.mxu0 0.0
    %485 = vmatprep.subr.mxu0 0.0
    %486 = vmatpush1.msra.mxu0 0.0
    %487 = vmatprep.subr.mxu0 0.0
    %488 = vmatpush1.msra.mxu0 0.0
    %489 = vmatprep.subr.mxu0 0.0
    %490 = vmatpush1.msra.mxu0 0.0
    %491 = vmatprep.subr.mxu0 0.0
    %492 = vmatpush1.msra.mxu0 0.0
    %493 = vmatprep.subr.mxu0 0.0
    %494 = vmatpush1.msra.mxu0 0.0
    %495 = vmatprep.subr.mxu0 0.0
    %496 = vmatpush1.msra.mxu0 0.0
    %497 = vmatprep.subr.mxu0 0.0
    %498 = vmatpush1.msra.mxu0 0.0
    %499 = vmatprep.subr.mxu0 0.0
    %500 = vmatpush1.msra.mxu0 0.0
    %501 = vmatprep.subr.mxu0 0.0
    %502 = vmatpush1.msra.mxu0 0.0
    %503 = vmatprep.mubr.f32.mxu0 0.0
    %504 = vmatmul.mubr.f32.gmra.mrb[0].mxu0 %v437
    %v505 = vpop.f32.mrb[0].mxu0
    %v506 = vadd.f32 %v433, %v505
    %v507 = vpop.f32.mrb[0].mxu0
    %508 = vdwg.mxu0
    %v509 = vld [vmem:[%s10] sm:$0xff]
    %v510 = vld [vmem:[%s11] sm:$0x1]
    %v512 = vlaneseq
    %v513 = vshrl.u32 %v512, 7
    %v514 = vsub.s32 0, %v513
    %v515 = vrot.slane %v510, %v514
    %v517 = vrot.slane %v342, 2
    %v518 = vsel %vm154, %v517, 0
    %520 = vmatprep.subr.mxu0 0.0
    %521 = vmatpush1.msra.mxu0 %v509
    %522 = vmatprep.subr.mxu0 0.0
    %523 = vmatpush1.msra.mxu0 0.0
    %524 = vmatprep.subr.mxu0 0.0
    %525 = vmatpush1.msra.mxu0 0.0
    %526 = vmatprep.subr.mxu0 0.0
    %527 = vmatpush1.msra.mxu0 0.0
    %528 = vmatprep.subr.mxu0 0.0
    %529 = vmatpush1.msra.mxu0 0.0
    %530 = vmatprep.subr.mxu0 0.0
    %531 = vmatpush1.msra.mxu0 0.0
    %532 = vmatprep.subr.mxu0 0.0
    %533 = vmatpush1.msra.mxu0 0.0
    %534 = vmatprep.subr.mxu0 0.0
    %535 = vmatpush1.msra.mxu0 0.0
    %536 = vmatprep.subr.mxu0 0.0
    %537 = vmatpush1.msra.mxu0 0.0
    %538 = vmatprep.subr.mxu0 0.0
    %539 = vmatpush1.msra.mxu0 0.0
    %540 = vmatprep.subr.mxu0 0.0
    %541 = vmatpush1.msra.mxu0 0.0
    %542 = vmatprep.subr.mxu0 0.0
    %543 = vmatpush1.msra.mxu0 0.0
    %544 = vmatprep.subr.mxu0 0.0
    %545 = vmatpush1.msra.mxu0 0.0
    %546 = vmatprep.subr.mxu0 0.0
    %547 = vmatpush1.msra.mxu0 0.0
    %548 = vmatprep.subr.mxu0 0.0
    %549 = vmatpush1.msra.mxu0 0.0
    %550 = vmatprep.subr.mxu0 0.0
    %551 = vmatpush1.msra.mxu0 0.0
    %552 = vmatprep.subr.mxu0 0.0
    %553 = vmatpush1.msra.mxu0 0.0
    %554 = vmatprep.subr.mxu0 0.0
    %555 = vmatpush1.msra.mxu0 0.0
    %556 = vmatprep.subr.mxu0 0.0
    %557 = vmatpush1.msra.mxu0 0.0
    %558 = vmatprep.subr.mxu0 0.0
    %559 = vmatpush1.msra.mxu0 0.0
    %560 = vmatprep.subr.mxu0 0.0
    %561 = vmatpush1.msra.mxu0 0.0
    %562 = vmatprep.subr.mxu0 0.0
    %563 = vmatpush1.msra.mxu0 0.0
    %564 = vmatprep.subr.mxu0 0.0
    %565 = vmatpush1.msra.mxu0 0.0
    %566 = vmatprep.subr.mxu0 0.0
    %567 = vmatpush1.msra.mxu0 0.0
    %568 = vmatprep.subr.mxu0 0.0
    %569 = vmatpush1.msra.mxu0 0.0
    %570 = vmatprep.subr.mxu0 0.0
    %571 = vmatpush1.msra.mxu0 0.0
    %572 = vmatprep.subr.mxu0 0.0
    %573 = vmatpush1.msra.mxu0 0.0
    %574 = vmatprep.subr.mxu0 0.0
    %575 = vmatpush1.msra.mxu0 0.0
    %576 = vmatprep.subr.mxu0 0.0
    %577 = vmatpush1.msra.mxu0 0.0
    %578 = vmatprep.subr.mxu0 0.0
    %579 = vmatpush1.msra.mxu0 0.0
    %580 = vmatprep.subr.mxu0 0.0
    %581 = vmatpush1.msra.mxu0 0.0
    %582 = vmatprep.subr.mxu0 0.0
    %583 = vmatpush1.msra.mxu0 0.0
    %584 = vmatprep.mubr.f32.mxu0 0.0
    %585 = vmatmul.mubr.f32.gmra.mrb[0].mxu0 %v518
    %v586 = vpop.f32.mrb[0].mxu0
    %v587 = vadd.f32 %v515, %v586
    %v588 = vpop.f32.mrb[0].mxu0
    %589 = vdwg.mxu0
    %v590 = vld [vmem:[#allocation12] sm:$0xff]
    %v591 = vld [vmem:[#allocation12 + $0x8] sm:$0xff]
    %v592 = vld [vmem:[#allocation12 + $0x10] sm:$0xff]
    %v593 = vld [vmem:[#allocation12 + $0x18] sm:$0xff]
    %v594 = vld [vmem:[%s13] sm:$0x1]
    %v596 = vlaneseq
    %v597 = vshrl.u32 %v596, 7
    %v598 = vsub.s32 0, %v597
    %v599 = vrot.slane %v594, %v598
    %v602 = vsel %vm435, %v587, 0
    %604 = vmatprep.subr.mxu0 0.0
    %605 = vmatpush1.msra.mxu0 %v590
    %606 = vmatprep.subr.mxu0 0.0
    %607 = vmatpush1.msra.mxu0 %v591
    %608 = vmatprep.subr.mxu0 0.0
    %609 = vmatpush1.msra.mxu0 %v592
    %610 = vmatprep.subr.mxu0 0.0
    %611 = vmatpush1.msra.mxu0 %v593
    %612 = vmatprep.subr.mxu0 0.0
    %613 = vmatpush1.msra.mxu0 0.0
    %614 = vmatprep.subr.mxu0 0.0
    %615 = vmatpush1.msra.mxu0 0.0
    %616 = vmatprep.subr.mxu0 0.0
    %617 = vmatpush1.msra.mxu0 0.0
    %618 = vmatprep.subr.mxu0 0.0
    %619 = vmatpush1.msra.mxu0 0.0
    %620 = vmatprep.subr.mxu0 0.0
    %621 = vmatpush1.msra.mxu0 0.0
    %622 = vmatprep.subr.mxu0 0.0
    %623 = vmatpush1.msra.mxu0 0.0
    %624 = vmatprep.subr.mxu0 0.0
    %625 = vmatpush1.msra.mxu0 0.0
    %626 = vmatprep.subr.mxu0 0.0
    %627 = vmatpush1.msra.mxu0 0.0
    %628 = vmatprep.subr.mxu0 0.0
    %629 = vmatpush1.msra.mxu0 0.0
    %630 = vmatprep.subr.mxu0 0.0
    %631 = vmatpush1.msra.mxu0 0.0
    %632 = vmatprep.subr.mxu0 0.0
    %633 = vmatpush1.msra.mxu0 0.0
    %634 = vmatprep.subr.mxu0 0.0
    %635 = vmatpush1.msra.mxu0 0.0
    %636 = vmatprep.subr.mxu0 0.0
    %637 = vmatpush1.msra.mxu0 0.0
    %638 = vmatprep.subr.mxu0 0.0
    %639 = vmatpush1.msra.mxu0 0.0
    %640 = vmatprep.subr.mxu0 0.0
    %641 = vmatpush1.msra.mxu0 0.0
    %642 = vmatprep.subr.mxu0 0.0
    %643 = vmatpush1.msra.mxu0 0.0
    %644 = vmatprep.subr.mxu0 0.0
    %645 = vmatpush1.msra.mxu0 0.0
    %646 = vmatprep.subr.mxu0 0.0
    %647 = vmatpush1.msra.mxu0 0.0
    %648 = vmatprep.subr.mxu0 0.0
    %649 = vmatpush1.msra.mxu0 0.0
    %650 = vmatprep.subr.mxu0 0.0
    %651 = vmatpush1.msra.mxu0 0.0
    %652 = vmatprep.subr.mxu0 0.0
    %653 = vmatpush1.msra.mxu0 0.0
    %654 = vmatprep.subr.mxu0 0.0
    %655 = vmatpush1.msra.mxu0 0.0
    %656 = vmatprep.subr.mxu0 0.0
    %657 = vmatpush1.msra.mxu0 0.0
    %658 = vmatprep.subr.mxu0 0.0
    %659 = vmatpush1.msra.mxu0 0.0
    %660 = vmatprep.subr.mxu0 0.0
    %661 = vmatpush1.msra.mxu0 0.0
    %662 = vmatprep.subr.mxu0 0.0
    %663 = vmatpush1.msra.mxu0 0.0
    %664 = vmatprep.subr.mxu0 0.0
    %665 = vmatpush1.msra.mxu0 0.0
    %666 = vmatprep.subr.mxu0 0.0
    %667 = vmatpush1.msra.mxu0 0.0
    %668 = vmatprep.mubr.f32.mxu0 0.0
    %669 = vmatmul.mubr.f32.gmra.mrb[0].mxu0 %v602
    %v670 = vpop.f32.mrb[0].mxu0
    %v671 = vadd.f32 %v599, %v670
    %v672 = vpop.f32.mrb[0].mxu0
    %673 = vdwg.mxu0
    %vm674 = vcmask 254976
    %675 = vst.msk [vmem:[#allocation14] sm:$0x3] %vm674, %v506
    %677 = vrot.lane.b32.xlu0 %v671, 32
    %v678 = vpop.permute.xlu0 %677
    %vm680 = vcmask 517376
    %681 = vst.msk [vmem:[#allocation14] sm:$0x3] %vm680, %v678
    // Predicated region
    $region82: #{tpu_custom_call.1} parent=1 // pred_check
      _
    $region83: #{tpu_custom_call.1} parent=1 // pred_check_branch
      %683 = sbr.rel (0) target = $region85
    $region84: #{tpu_custom_call.1} parent=1 // pred_region
      %s685 = ssub.s32 32, 32
      %686 = vsyncadd [#allocation5], %s685
      %s688 = sshll.u32 [#allocation14], 4
      %s689 = int_to_ptr.vmem [resolvable:$true] %s688
      %691 = dma.vmem_to_hbm [thread:$0]  %s689, 32, %s14, [#allocation5]
    $region85: #{tpu_custom_call.1} parent=1 // pred_fallthru
      _
    // Predicated region
    $region86: #{tpu_custom_call.1} parent=1 // pred_check
      _
    $region87: #{tpu_custom_call.1} parent=1 // pred_check_branch
      %693 = sbr.rel (0) target = $region89
    $region88: #{tpu_custom_call.1} parent=1 // pred_region
      %694 = dma.done [#allocation5], 32
    $region89: #{tpu_custom_call.1} parent=1 // pred_fallthru
      _
    %695 = vsyncpa [#allocation4], 1
    %696 = vsyncpa [#allocation7], 1
    %697 = vsyncpa [#allocation10], 1
    %698 = vsyncpa [#allocation13], 1
    %699 = vsyncpa [#allocation5], 1

</llo_original>
